<compile_context>
chip_gen: v7x
topology: tpu7x:2x2x1
jax: 0.10.0
libtpu: 0.0.40
codegen_flags: <defaults>
</compile_context>

<pallas_src>
import functools

import jax
import jax.numpy as jnp
from jax.experimental import pallas as pl
from jax.experimental.pallas import tpu as pltpu

COMPUTE_DTYPE = jnp.bfloat16   # MXU input / output-store dtype; accumulation is f32.
_SUBLANE = 16                  # lcm of f32 (8) and bf16 (16) sublane tiling.


def _round_up(x: int, m: int) -> int:
    return ((x + m - 1) // m) * m


def _cdiv(a: int, b: int) -> int:
    return -(-a // b)


def _pad_feature(n: int) -> int:
    # v6e/v7x MXUs are 2x256x256: align large feature dims to 256.  Below 256
    # (and on v5e's 4x128^2 MXU) a 128-lane multiple is already optimal.
    return _round_up(n, 256) if n >= 256 else _round_up(n, 128)


def _choose_batch_tile(batch: int, tb_max: int = 512):
    """Largest tile <= tb_max that minimizes dead-row padding.

    Multi-step runs keep an even number of grid steps so the "parallel" grid
    axis can be split across v7x's two TensorCores; single-step (small batch)
    stays single-step on v5e/v6e to avoid per-step overhead.
    """
    n_steps = _cdiv(batch, tb_max)
    if n_steps > 1 and n_steps % 2 == 1:
        n_steps += 1
    tb = _round_up(_cdiv(batch, n_steps), _SUBLANE)
    nb = _cdiv(batch, tb)
    return tb, nb


def actor_kernel(state_ref, w1_ref, b1_ref, w2_ref, b2_ref, w3_ref, b3_ref,
                 out_ref):
    """Fused 3-layer MLP: (relu . linear) x2 -> tanh . linear, one batch tile."""
    # State is streamed as raw f32 (unpadded K); cast to bf16 for the MXU here
    # so the wrapper does not need a separate pad/convert pass over the batch.
    x = state_ref[...].astype(COMPUTE_DTYPE)                       # (TB, S)

    # fc1 + relu  (f32 accumulation, f32 elementwise)
    h1 = jnp.dot(x, w1_ref[...], preferred_element_type=jnp.float32)
    h1 = jnp.maximum(h1 + b1_ref[...], 0.0)

    # TODO(synk): train-mode nn.Dropout(0.1) would need pltpu.prng_seed /
    # pltpu.prng_random_bits masking with per-grid-step seeding; this kernel
    # reproduces eval-mode forward (dropout == identity).

    # fc2 + relu
    h2 = jnp.dot(h1.astype(COMPUTE_DTYPE), w2_ref[...],
                 preferred_element_type=jnp.float32)
    h2 = jnp.maximum(h2 + b2_ref[...], 0.0)

    # fc3 + tanh  (store bf16: halves the dominant HBM write stream)
    h3 = jnp.dot(h2.astype(COMPUTE_DTYPE), w3_ref[...],
                 preferred_element_type=jnp.float32)
    out_ref[...] = jnp.tanh(h3 + b3_ref[...]).astype(out_ref.dtype)


def prepare_actor_params(w1, b1, w2, b2, w3, b3):
    """One-time (init-time) padding + bf16 cast of the resident operands.

    Weights are stored [in_features, out_features].  Output feature dims are
    zero-padded to lane multiples (exact: zero rows/cols contribute nothing
    through matmul + relu).  The fc1 *input* dim is left at state_dim so the
    streamed state needs no lane padding.  Weights -> bf16 (MXU inputs);
    biases stay f32 (VPU add; v5e has no bf16 VPU path).
    """
    state_dim, hidden_dim = w1.shape
    action_dim = w3.shape[1]
    h_pad = _pad_feature(hidden_dim)
    a_pad = _pad_feature(action_dim)
    dh = h_pad - hidden_dim
    da = a_pad - action_dim

    w1_p = jnp.pad(w1, ((0, 0), (0, dh))).astype(COMPUTE_DTYPE)
    w2_p = jnp.pad(w2, ((0, dh), (0, dh))).astype(COMPUTE_DTYPE)
    w3_p = jnp.pad(w3, ((0, dh), (0, da))).astype(COMPUTE_DTYPE)
    b1_p = jnp.pad(b1.reshape(1, -1), ((0, 0), (0, dh))).astype(jnp.float32)
    b2_p = jnp.pad(b2.reshape(1, -1), ((0, 0), (0, dh))).astype(jnp.float32)
    b3_p = jnp.pad(b3.reshape(1, -1), ((0, 0), (0, da))).astype(jnp.float32)
    return (w1_p, b1_p, w2_p, b2_p, w3_p, b3_p)


@functools.partial(jax.jit, static_argnames=("action_dim",))
def actor_forward(state, params, *, action_dim):
    """state: (batch, state_dim) f32. params: output of prepare_actor_params.

    Returns (batch, action_dim) bf16 (upcast outside only if a consumer needs
    f32).
    """
    w1_p, b1_p, w2_p, b2_p, w3_p, b3_p = params
    batch, state_dim = state.shape
    h_pad = w1_p.shape[1]
    a_pad = w3_p.shape[1]

    tb, nb = _choose_batch_tile(batch)
    b_pad = tb * nb
    if b_pad != batch:                       # minimal dead-row padding only
        state = jnp.pad(state, ((0, b_pad - batch), (0, 0)))

    def resident(shape):
        # Constant index map -> same VMEM block reused every grid step.
        # TODO(synk): for production hidden_dim on v7x (64 MiB VMEM) add
        # pipeline_mode=pl.Buffered(1) here plus an explicit vmem_limit_bytes;
        # W2 grows quadratically and eventually needs a K-tiled reduction axis
        # with an f32 accumulator.
        return pl.BlockSpec(shape, lambda i: (0, 0))

    flops = 2 * b_pad * (state_dim * h_pad + h_pad * h_pad + h_pad * a_pad)
    bytes_accessed = (
        state.size * state.dtype.itemsize                      # f32 state read
        + sum(a.size * a.dtype.itemsize for a in params)       # resident operands
        + b_pad * a_pad * 2)                                    # bf16 output write

    out = pl.pallas_call(
        actor_kernel,
        out_shape=jax.ShapeDtypeStruct((b_pad, a_pad), COMPUTE_DTYPE),
        grid=(nb,),
        in_specs=[
            # Streamed state tile: true (unpadded) feature dim, f32.
            pl.BlockSpec((tb, state_dim), lambda i: (i, 0)),
            resident(w1_p.shape), resident(b1_p.shape),
            resident(w2_p.shape), resident(b2_p.shape),
            resident(w3_p.shape), resident(b3_p.shape),
        ],
        out_specs=pl.BlockSpec((tb, a_pad), lambda i: (i, 0)),  # lane-dense store
        compiler_params=pltpu.CompilerParams(
            dimension_semantics=("parallel",)),                 # v7x megacore
        cost_estimate=pl.CostEstimate(
            flops=flops,
            transcendentals=b_pad * a_pad,
            bytes_accessed=bytes_accessed),
    )(state, w1_p, b1_p, w2_p, b2_p, w3_p, b3_p)

    # Strip batch / lane padding back to the logical shape.  (Callers that can
    # consume the padded bf16 slab directly may skip this slice.)
    return out[:batch, :action_dim]


def init_actor_params(key, state_dim, action_dim, hidden_dim):
    """PyTorch nn.Linear-style init (U[-1/sqrt(fan_in), 1/sqrt(fan_in)]).

    Weights are stored as [in_features, out_features] (transpose of PyTorch);
    biases as [out_features].
    """
    keys = jax.random.split(key, 6)

    def linear(kw, kb, fan_in, fan_out):
        bound = 1.0 / jnp.sqrt(jnp.float32(fan_in))
        w = jax.random.uniform(kw, (fan_in, fan_out), jnp.float32, -bound, bound)
        b = jax.random.uniform(kb, (fan_out,), jnp.float32, -bound, bound)
        return w, b

    w1, b1 = linear(keys[0], keys[1], state_dim, hidden_dim)
    w2, b2 = linear(keys[2], keys[3], hidden_dim, hidden_dim)
    w3, b3 = linear(keys[4], keys[5], hidden_dim, action_dim)
    return w1, b1, w2, b2, w3, b3


def reference_forward(state, w1, b1, w2, b2, w3, b3):
    x = jnp.maximum(state @ w1 + b1, 0.0)
    x = jnp.maximum(x @ w2 + b2, 0.0)
    return jnp.tanh(x @ w3 + b3)


if __name__ == "__main__":
    key = jax.random.PRNGKey(0)
    k_state, k_params, k_big = jax.random.split(key, 3)

    batch, state_dim, action_dim, hidden_dim = 2, 16, 4, 32
    raw_params = init_actor_params(k_params, state_dim, action_dim, hidden_dim)
    # One-time pad + bf16 cast (NOT in the per-call path).
    params = prepare_actor_params(*raw_params)

    # Small-batch check (single grid step).
    state = jax.random.normal(k_state, (batch, state_dim), jnp.float32)
    out = jax.block_until_ready(
        actor_forward(state, params, action_dim=action_dim))
    ref = reference_forward(state, *raw_params)
    assert out.shape == (batch, action_dim)
    assert jnp.allclose(out.astype(jnp.float32), ref, atol=2e-2, rtol=2e-2), \
        "mismatch vs reference"

    # Larger batch exercises the multi-step pipelined grid (2 tiles of 304).
    big_batch = 600
    state_big = jax.random.normal(k_big, (big_batch, state_dim), jnp.float32)
    out_big = jax.block_until_ready(
        actor_forward(state_big, params, action_dim=action_dim))
    ref_big = reference_forward(state_big, *raw_params)
    assert out_big.shape == (big_batch, action_dim)
    assert jnp.allclose(out_big.astype(jnp.float32), ref_big,
                        atol=2e-2, rtol=2e-2), \
        "mismatch vs reference (large batch)"

    print("KERNEL_OK")
</pallas_src>

<mosaic_0001>
module attributes {stable_mosaic.version = 11 : i64} {
  func.func @actor_kernel(%arg0: i32, %arg1: memref<16x16xf32, #tpu.memory_space<vmem>>, %arg2: memref<16x128xbf16, #tpu.memory_space<vmem>>, %arg3: memref<1x128xf32, #tpu.memory_space<vmem>>, %arg4: memref<128x128xbf16, #tpu.memory_space<vmem>>, %arg5: memref<1x128xf32, #tpu.memory_space<vmem>>, %arg6: memref<128x128xbf16, #tpu.memory_space<vmem>>, %arg7: memref<1x128xf32, #tpu.memory_space<vmem>>, %arg8: memref<16x128xbf16, #tpu.memory_space<vmem>>) attributes {dimension_semantics = [#tpu.dimension_semantics<parallel>], iteration_bounds = array<i64: 1>, scalar_prefetch = 0 : i64, scratch_operands = 0 : i64, tpu.core_type = #tpu.core_type<tc>, window_params = [{transform_indices = @transform_0, window_bounds = array<i64: 16, 16>}, {pipeline_mode = #tpu.pipeline_mode<synchronous>, transform_indices = @transform_1, window_bounds = array<i64: 16, 128>}, {pipeline_mode = #tpu.pipeline_mode<synchronous>, transform_indices = @transform_2, window_bounds = array<i64: 1, 128>}, {pipeline_mode = #tpu.pipeline_mode<synchronous>, transform_indices = @transform_3, window_bounds = array<i64: 128, 128>}, {pipeline_mode = #tpu.pipeline_mode<synchronous>, transform_indices = @transform_4, window_bounds = array<i64: 1, 128>}, {pipeline_mode = #tpu.pipeline_mode<synchronous>, transform_indices = @transform_5, window_bounds = array<i64: 128, 128>}, {pipeline_mode = #tpu.pipeline_mode<synchronous>, transform_indices = @transform_6, window_bounds = array<i64: 1, 128>}, {transform_indices = @transform_7, window_bounds = array<i64: 16, 128>}]} {
    %c0 = arith.constant 0 : index
    %c0_0 = arith.constant 0 : index
    %0 = vector.load %arg1[%c0, %c0_0] : memref<16x16xf32, #tpu.memory_space<vmem>>, vector<16x16xf32>
    %1 = arith.truncf %0 : vector<16x16xf32> to vector<16x16xbf16>
    %c0_1 = arith.constant 0 : index
    %c0_2 = arith.constant 0 : index
    %2 = vector.load %arg2[%c0_1, %c0_2] : memref<16x128xbf16, #tpu.memory_space<vmem>>, vector<16x128xbf16>
    %cst = arith.constant dense<0.000000e+00> : vector<16x128xf32>
    %3 = tpu.matmul %1, %2, %cst {dimension_numbers = #tpu.dot_dimension_numbers<[1], [0], [0], [1], [0, 0, 1, 1], [], []>} : vector<16x16xbf16>, vector<16x128xbf16>, vector<16x128xf32> -> vector<16x128xf32>
    %c0_3 = arith.constant 0 : index
    %c0_4 = arith.constant 0 : index
    %4 = vector.load %arg3[%c0_3, %c0_4] : memref<1x128xf32, #tpu.memory_space<vmem>>, vector<1x128xf32>
    %5 = vector.broadcast %4 : vector<1x128xf32> to vector<16x128xf32>
    %6 = arith.addf %3, %5 : vector<16x128xf32>
    %cst_5 = arith.constant 0.000000e+00 : f32
    %7 = vector.broadcast %cst_5 : f32 to vector<16x128xf32>
    %8 = arith.maximumf %6, %7 : vector<16x128xf32>
    %9 = arith.truncf %8 : vector<16x128xf32> to vector<16x128xbf16>
    %c0_6 = arith.constant 0 : index
    %c0_7 = arith.constant 0 : index
    %10 = vector.load %arg4[%c0_6, %c0_7] : memref<128x128xbf16, #tpu.memory_space<vmem>>, vector<128x128xbf16>
    %cst_8 = arith.constant dense<0.000000e+00> : vector<16x128xf32>
    %11 = tpu.matmul %9, %10, %cst_8 {dimension_numbers = #tpu.dot_dimension_numbers<[1], [0], [0], [1], [0, 0, 1, 1], [], []>} : vector<16x128xbf16>, vector<128x128xbf16>, vector<16x128xf32> -> vector<16x128xf32>
    %c0_9 = arith.constant 0 : index
    %c0_10 = arith.constant 0 : index
    %12 = vector.load %arg5[%c0_9, %c0_10] : memref<1x128xf32, #tpu.memory_space<vmem>>, vector<1x128xf32>
    %13 = vector.broadcast %12 : vector<1x128xf32> to vector<16x128xf32>
    %14 = arith.addf %11, %13 : vector<16x128xf32>
    %cst_11 = arith.constant 0.000000e+00 : f32
    %15 = vector.broadcast %cst_11 : f32 to vector<16x128xf32>
    %16 = arith.maximumf %14, %15 : vector<16x128xf32>
    %17 = arith.truncf %16 : vector<16x128xf32> to vector<16x128xbf16>
    %c0_12 = arith.constant 0 : index
    %c0_13 = arith.constant 0 : index
    %18 = vector.load %arg6[%c0_12, %c0_13] : memref<128x128xbf16, #tpu.memory_space<vmem>>, vector<128x128xbf16>
    %cst_14 = arith.constant dense<0.000000e+00> : vector<16x128xf32>
    %19 = tpu.matmul %17, %18, %cst_14 {dimension_numbers = #tpu.dot_dimension_numbers<[1], [0], [0], [1], [0, 0, 1, 1], [], []>} : vector<16x128xbf16>, vector<128x128xbf16>, vector<16x128xf32> -> vector<16x128xf32>
    %c0_15 = arith.constant 0 : index
    %c0_16 = arith.constant 0 : index
    %20 = vector.load %arg7[%c0_15, %c0_16] : memref<1x128xf32, #tpu.memory_space<vmem>>, vector<1x128xf32>
    %21 = vector.broadcast %20 : vector<1x128xf32> to vector<16x128xf32>
    %22 = arith.addf %19, %21 : vector<16x128xf32>
    %23 = math.tanh %22 : vector<16x128xf32>
    %24 = arith.truncf %23 : vector<16x128xf32> to vector<16x128xbf16>
    %c0_17 = arith.constant 0 : index
    %c0_18 = arith.constant 0 : index
    %25 = vector.load %arg8[%c0_17, %c0_18] : memref<16x128xbf16, #tpu.memory_space<vmem>>, vector<16x128xbf16>
    tpu.vector_store %arg8[%c0_17, %c0_18], %24 {strides = array<i32>} : memref<16x128xbf16, #tpu.memory_space<vmem>>, vector<16x128xbf16>,
    return
  }
  func.func @transform_0(%arg0: i32) -> (i32, i32) {
    %c0_i32 = arith.constant 0 : i32
    %c0_i32_0 = arith.constant 0 : i32
    return %arg0, %c0_i32 : i32, i32
  }
  func.func @transform_1(%arg0: i32) -> (i32, i32) {
    %c0_i32 = arith.constant 0 : i32
    %c0_i32_0 = arith.constant 0 : i32
    %c0_i32_1 = arith.constant 0 : i32
    return %c0_i32, %c0_i32_0 : i32, i32
  }
  func.func @transform_2(%arg0: i32) -> (i32, i32) {
    %c0_i32 = arith.constant 0 : i32
    %c0_i32_0 = arith.constant 0 : i32
    %c0_i32_1 = arith.constant 0 : i32
    return %c0_i32, %c0_i32_0 : i32, i32
  }
  func.func @transform_3(%arg0: i32) -> (i32, i32) {
    %c0_i32 = arith.constant 0 : i32
    %c0_i32_0 = arith.constant 0 : i32
    %c0_i32_1 = arith.constant 0 : i32
    return %c0_i32, %c0_i32_0 : i32, i32
  }
  func.func @transform_4(%arg0: i32) -> (i32, i32) {
    %c0_i32 = arith.constant 0 : i32
    %c0_i32_0 = arith.constant 0 : i32
    %c0_i32_1 = arith.constant 0 : i32
    return %c0_i32, %c0_i32_0 : i32, i32
  }
  func.func @transform_5(%arg0: i32) -> (i32, i32) {
    %c0_i32 = arith.constant 0 : i32
    %c0_i32_0 = arith.constant 0 : i32
    %c0_i32_1 = arith.constant 0 : i32
    return %c0_i32, %c0_i32_0 : i32, i32
  }
  func.func @transform_6(%arg0: i32) -> (i32, i32) {
    %c0_i32 = arith.constant 0 : i32
    %c0_i32_0 = arith.constant 0 : i32
    %c0_i32_1 = arith.constant 0 : i32
    return %c0_i32, %c0_i32_0 : i32, i32
  }
  func.func @transform_7(%arg0: i32) -> (i32, i32) {
    %c0_i32 = arith.constant 0 : i32
    %c0_i32_0 = arith.constant 0 : i32
    return %arg0, %c0_i32 : i32, i32
  }
}

</mosaic_0001>

<llo_original>
// kernel: actor_forward.1
$region0: #{actor_forward.1}
  #allocation0 [shape = 'u32[]', space=smem, size = 0x4, offset = 0x4, fixed_abs, tag = 'smem constant byte address 0x4 - core index']
  #allocation1 [shape = 'u32[144,128]{1,0:T(1,128)}', space=vmem, size = 0x12000, scoped, tag = 'internal scratch']
  %s0 = inlined_call_operand.vmem [shape: f32[16,16], index: 0, kind: input, shape index: {}]
  %s1 = inlined_call_operand.vmem [shape: bf16[16,128], index: 1, kind: input, shape index: {}]
  %s2 = inlined_call_operand.vmem [shape: f32[1,128], index: 2, kind: input, shape index: {}]
  %s3 = inlined_call_operand.hbm [shape: bf16[128,128], index: 3, kind: input, shape index: {}]
  %s4 = inlined_call_operand.vmem [shape: f32[1,128], index: 4, kind: input, shape index: {}]
  %s5 = inlined_call_operand.hbm [shape: bf16[128,128], index: 5, kind: input, shape index: {}]
  %s6 = inlined_call_operand.vmem [shape: f32[1,128], index: 6, kind: input, shape index: {}]
  %s7 = inlined_call_operand.vmem [shape: bf16[16,128], index: 7, kind: output, shape index: {}]
  %s8 = sld [smem:[#allocation0]]
  $region46: #{actor_forward.1} parent=0
    _
  %s10 = ssub.s32 1, %s8
  %s11 = scalar_select 0, %s10, %s8
  $region1: #{actor_forward.1} parent=0
    #allocation2 [shape = 'u8[32768]{0}', space=vmem, size = 0x8000, scoped, tag = 'input window, operand 3, single buffered']
    #allocation3 [shape = 's32[1]{0}', space=sflag, size = 0x4, scoped, tag = 'scoped memory for actor_forward.1']
    #allocation4 [shape = 'u8[32768]{0}', space=vmem, size = 0x8000, scoped, tag = 'input window, operand 5, single buffered']
    #allocation5 [shape = 's32[1]{0}', space=sflag, size = 0x4, scoped, tag = 'scoped memory for actor_forward.1']
    %12 = vsyncpa [#allocation3], 0
    %13 = vsyncpa [#allocation5], 0
    // Predicated region
    $region2: #{actor_forward.1} parent=1 // pred_check
      _
    $region3: #{actor_forward.1} parent=1 // pred_check_branch
      %15 = sbr.rel (0) target = $region5
    $region4: #{actor_forward.1} parent=1 // pred_region
      _
    $region5: #{actor_forward.1} parent=1 // pred_fallthru
      _
    // Predicated region
    $region6: #{actor_forward.1} parent=1 // pred_check
      _
    $region7: #{actor_forward.1} parent=1 // pred_check_branch
      %17 = sbr.rel (0) target = $region9
    $region8: #{actor_forward.1} parent=1 // pred_region
      _
    $region9: #{actor_forward.1} parent=1 // pred_fallthru
      _
    // Predicated region
    $region10: #{actor_forward.1} parent=1 // pred_check
      _
    $region11: #{actor_forward.1} parent=1 // pred_check_branch
      %19 = sbr.rel (0) target = $region13
    $region12: #{actor_forward.1} parent=1 // pred_region
      _
    $region13: #{actor_forward.1} parent=1 // pred_fallthru
      _
    // Predicated region
    $region14: #{actor_forward.1} parent=1 // pred_check
      _
    $region15: #{actor_forward.1} parent=1 // pred_check_branch
      %21 = sbr.rel (0) target = $region17
    $region16: #{actor_forward.1} parent=1 // pred_region
      %s23 = ssub.s32 1024, 1024
      %24 = vsyncadd [#allocation3], %s23
      %s25 = sshll.u32 [#allocation2], 4
      %s26 = int_to_ptr.vmem [resolvable:$true] %s25
      %31 = dma.hbm_to_vmem [thread:$0]  %s3, 1024, %s26, [#allocation3], 64, 64, 4
    $region17: #{actor_forward.1} parent=1 // pred_fallthru
      _
    // Predicated region
    $region18: #{actor_forward.1} parent=1 // pred_check
      _
    $region19: #{actor_forward.1} parent=1 // pred_check_branch
      %33 = sbr.rel (0) target = $region21
    $region20: #{actor_forward.1} parent=1 // pred_region
      _
    $region21: #{actor_forward.1} parent=1 // pred_fallthru
      _
    // Predicated region
    $region22: #{actor_forward.1} parent=1 // pred_check
      _
    $region23: #{actor_forward.1} parent=1 // pred_check_branch
      %35 = sbr.rel (0) target = $region25
    $region24: #{actor_forward.1} parent=1 // pred_region
      %s37 = ssub.s32 1024, 1024
      %38 = vsyncadd [#allocation5], %s37
      %s39 = sshll.u32 [#allocation4], 4
      %s40 = int_to_ptr.vmem [resolvable:$true] %s39
      %45 = dma.hbm_to_vmem [thread:$0]  %s5, 1024, %s40, [#allocation5], 64, 64, 4
    $region25: #{actor_forward.1} parent=1 // pred_fallthru
      _
    // Predicated region
    $region26: #{actor_forward.1} parent=1 // pred_check
      _
    $region27: #{actor_forward.1} parent=1 // pred_check_branch
      %47 = sbr.rel (0) target = $region29
    $region28: #{actor_forward.1} parent=1 // pred_region
      _
    $region29: #{actor_forward.1} parent=1 // pred_fallthru
      _
    // Predicated region
    $region30: #{actor_forward.1} parent=1 // pred_check
      _
    $region31: #{actor_forward.1} parent=1 // pred_check_branch
      %49 = sbr.rel (0) target = $region33
    $region32: #{actor_forward.1} parent=1 // pred_region
      %50 = dma.done [#allocation3], 1024
    $region33: #{actor_forward.1} parent=1 // pred_fallthru
      _
    // Predicated region
    $region34: #{actor_forward.1} parent=1 // pred_check
      _
    $region35: #{actor_forward.1} parent=1 // pred_check_branch
      %52 = sbr.rel (0) target = $region37
    $region36: #{actor_forward.1} parent=1 // pred_region
      %53 = dma.done [#allocation5], 1024
    $region37: #{actor_forward.1} parent=1 // pred_fallthru
      _
    %v55 = vld [vmem:[%s0] sm:$0xff]
    %v56 = vld [vmem:[%s0 + $0x8] sm:$0xff]
    %v57 = vpack.c.bf16 %v56, %v55
    %v58 = vld [vmem:[%s1] sm:$0xf]
    %v59 = vld [vmem:[%s1 + $0x4] sm:$0xf]
    %v60 = vld [vmem:[%s2] sm:$0x1]
    %v62 = vlaneseq
    %v63 = vshrl.u32 %v62, 7
    %v64 = vsub.s32 0, %v63
    %v65 = vrot.slane %v60, %v64
    %v69 = vunpack.c.l.b16 %v58
    %v70 = vunpack.c.l.b16 %v59
    %v71 = vpack.c.b16 %v70, %v69
    %vm73 = vcmask 130048
    %v75 = vsel %vm73, %v57, 0
    %77 = vmatprep.subr.bf16.mxu0 0
    %78 = vmatpush1.bf16.msra.mxu0 %v71
    %79 = vmatprep.subr.bf16.mxu0 0
    %80 = vmatpush1.bf16.msra.mxu0 0
    %81 = vmatprep.subr.bf16.mxu0 0
    %82 = vmatpush1.bf16.msra.mxu0 0
    %83 = vmatprep.subr.bf16.mxu0 0
    %84 = vmatpush1.bf16.msra.mxu0 0
    %85 = vmatprep.subr.bf16.mxu0 0
    %86 = vmatpush1.bf16.msra.mxu0 0
    %87 = vmatprep.subr.bf16.mxu0 0
    %88 = vmatpush1.bf16.msra.mxu0 0
    %89 = vmatprep.subr.bf16.mxu0 0
    %90 = vmatpush1.bf16.msra.mxu0 0
    %91 = vmatprep.subr.bf16.mxu0 0
    %92 = vmatpush1.bf16.msra.mxu0 0
    %93 = vmatprep.subr.bf16.mxu0 0
    %94 = vmatpush1.bf16.msra.mxu0 0
    %95 = vmatprep.subr.bf16.mxu0 0
    %96 = vmatpush1.bf16.msra.mxu0 0
    %97 = vmatprep.subr.bf16.mxu0 0
    %98 = vmatpush1.bf16.msra.mxu0 0
    %99 = vmatprep.subr.bf16.mxu0 0
    %100 = vmatpush1.bf16.msra.mxu0 0
    %101 = vmatprep.subr.bf16.mxu0 0
    %102 = vmatpush1.bf16.msra.mxu0 0
    %103 = vmatprep.subr.bf16.mxu0 0
    %104 = vmatpush1.bf16.msra.mxu0 0
    %105 = vmatprep.subr.bf16.mxu0 0
    %106 = vmatpush1.bf16.msra.mxu0 0
    %107 = vmatprep.subr.bf16.mxu0 0
    %108 = vmatpush1.bf16.msra.mxu0 0
    %109 = vmatprep.mubr.bf16.mxu0 0
    %110 = vmatmul.mubr.bf16.gmra.mrb[0].mxu0 %v75
    %v111 = vpop.f32.mrb[0].mxu0
    %v112 = vadd.f32 %v65, %v111
    %v113 = vpop.f32.mrb[0].mxu0
    %v114 = vpop.f32.mrb[0].mxu0
    %v115 = vadd.f32 %v65, %v114
    %v116 = vpop.f32.mrb[0].mxu0
    %117 = vdwg.mxu0
    %v118 = vmax.f32 %v112, 0.0
    %v119 = vmax.f32 %v115, 0.0
    %v120 = vpack.c.bf16 %v119, %v118
    %v121 = vld [vmem:[#allocation2] sm:$0xf]
    %v122 = vld [vmem:[#allocation2 + $0x4] sm:$0xf]
    %v123 = vld [vmem:[#allocation2 + $0x8] sm:$0xf]
    %v124 = vld [vmem:[#allocation2 + $0xc] sm:$0xf]
    %v125 = vld [vmem:[#allocation2 + $0x10] sm:$0xf]
    %v126 = vld [vmem:[#allocation2 + $0x14] sm:$0xf]
    %v127 = vld [vmem:[#allocation2 + $0x18] sm:$0xf]
    %v128 = vld [vmem:[#allocation2 + $0x1c] sm:$0xf]
    %v129 = vld [vmem:[#allocation2 + $0x20] sm:$0xf]
    %v130 = vld [vmem:[#allocation2 + $0x24] sm:$0xf]
    %v131 = vld [vmem:[#allocation2 + $0x28] sm:$0xf]
    %v132 = vld [vmem:[#allocation2 + $0x2c] sm:$0xf]
    %v133 = vld [vmem:[#allocation2 + $0x30] sm:$0xf]
    %v134 = vld [vmem:[#allocation2 + $0x34] sm:$0xf]
    %v135 = vld [vmem:[#allocation2 + $0x38] sm:$0xf]
    %v136 = vld [vmem:[#allocation2 + $0x3c] sm:$0xf]
    %v137 = vld [vmem:[%s4] sm:$0x1]
    %v139 = vlaneseq
    %v140 = vshrl.u32 %v139, 7
    %v141 = vsub.s32 0, %v140
    %v142 = vrot.slane %v137, %v141
    %v160 = vunpack.c.l.b16 %v121
    %v161 = vunpack.c.l.b16 %v122
    %v162 = vunpack.c.l.b16 %v123
    %v163 = vunpack.c.l.b16 %v124
    %v164 = vunpack.c.l.b16 %v125
    %v165 = vunpack.c.l.b16 %v126
    %v166 = vunpack.c.l.b16 %v127
    %v167 = vunpack.c.l.b16 %v128
    %v168 = vunpack.c.l.b16 %v129
    %v169 = vunpack.c.l.b16 %v130
    %v170 = vunpack.c.l.b16 %v131
    %v171 = vunpack.c.l.b16 %v132
    %v172 = vunpack.c.l.b16 %v133
    %v173 = vunpack.c.l.b16 %v134
    %v174 = vunpack.c.l.b16 %v135
    %v175 = vunpack.c.l.b16 %v136
    %v176 = vpack.c.b16 %v161, %v160
    %v177 = vpack.c.b16 %v163, %v162
    %v178 = vpack.c.b16 %v165, %v164
    %v179 = vpack.c.b16 %v167, %v166
    %v180 = vpack.c.b16 %v169, %v168
    %v181 = vpack.c.b16 %v171, %v170
    %v182 = vpack.c.b16 %v173, %v172
    %v183 = vpack.c.b16 %v175, %v174
    %192 = vmatprep.subr.bf16.mxu0 0
    %193 = vmatpush1.bf16.msra.mxu0 %v176
    %194 = vmatprep.subr.bf16.mxu0 0
    %195 = vmatpush1.bf16.msra.mxu0 %v177
    %196 = vmatprep.subr.bf16.mxu0 0
    %197 = vmatpush1.bf16.msra.mxu0 %v178
    %198 = vmatprep.subr.bf16.mxu0 0
    %199 = vmatpush1.bf16.msra.mxu0 %v179
    %200 = vmatprep.subr.bf16.mxu0 0
    %201 = vmatpush1.bf16.msra.mxu0 %v180
    %202 = vmatprep.subr.bf16.mxu0 0
    %203 = vmatpush1.bf16.msra.mxu0 %v181
    %204 = vmatprep.subr.bf16.mxu0 0
    %205 = vmatpush1.bf16.msra.mxu0 %v182
    %206 = vmatprep.subr.bf16.mxu0 0
    %207 = vmatpush1.bf16.msra.mxu0 %v183
    %208 = vmatprep.subr.bf16.mxu0 0
    %209 = vmatpush1.bf16.msra.mxu0 0
    %210 = vmatprep.subr.bf16.mxu0 0
    %211 = vmatpush1.bf16.msra.mxu0 0
    %212 = vmatprep.subr.bf16.mxu0 0
    %213 = vmatpush1.bf16.msra.mxu0 0
    %214 = vmatprep.subr.bf16.mxu0 0
    %215 = vmatpush1.bf16.msra.mxu0 0
    %216 = vmatprep.subr.bf16.mxu0 0
    %217 = vmatpush1.bf16.msra.mxu0 0
    %218 = vmatprep.subr.bf16.mxu0 0
    %219 = vmatpush1.bf16.msra.mxu0 0
    %220 = vmatprep.subr.bf16.mxu0 0
    %221 = vmatpush1.bf16.msra.mxu0 0
    %222 = vmatprep.subr.bf16.mxu0 0
    %223 = vmatpush1.bf16.msra.mxu0 0
    %224 = vmatprep.mubr.bf16.mxu0 0
    %225 = vmatmul.mubr.bf16.gmra.mrb[0].mxu0 %v120
    %v226 = vpop.f32.mrb[0].mxu0
    %v227 = vadd.f32 %v142, %v226
    %v228 = vpop.f32.mrb[0].mxu0
    %v229 = vpop.f32.mrb[0].mxu0
    %v230 = vadd.f32 %v142, %v229
    %v231 = vpop.f32.mrb[0].mxu0
    %232 = vdwg.mxu0
    %v233 = vmax.f32 %v227, 0.0
    %v234 = vmax.f32 %v230, 0.0
    %v235 = vpack.c.bf16 %v234, %v233
    %v236 = vld [vmem:[#allocation4] sm:$0xf]
    %v237 = vld [vmem:[#allocation4 + $0x4] sm:$0xf]
    %v238 = vld [vmem:[#allocation4 + $0x8] sm:$0xf]
    %v239 = vld [vmem:[#allocation4 + $0xc] sm:$0xf]
    %v240 = vld [vmem:[#allocation4 + $0x10] sm:$0xf]
    %v241 = vld [vmem:[#allocation4 + $0x14] sm:$0xf]
    %v242 = vld [vmem:[#allocation4 + $0x18] sm:$0xf]
    %v243 = vld [vmem:[#allocation4 + $0x1c] sm:$0xf]
    %v244 = vld [vmem:[#allocation4 + $0x20] sm:$0xf]
    %v245 = vld [vmem:[#allocation4 + $0x24] sm:$0xf]
    %v246 = vld [vmem:[#allocation4 + $0x28] sm:$0xf]
    %v247 = vld [vmem:[#allocation4 + $0x2c] sm:$0xf]
    %v248 = vld [vmem:[#allocation4 + $0x30] sm:$0xf]
    %v249 = vld [vmem:[#allocation4 + $0x34] sm:$0xf]
    %v250 = vld [vmem:[#allocation4 + $0x38] sm:$0xf]
    %v251 = vld [vmem:[#allocation4 + $0x3c] sm:$0xf]
    %v252 = vld [vmem:[%s6] sm:$0x1]
    %v254 = vlaneseq
    %v255 = vshrl.u32 %v254, 7
    %v256 = vsub.s32 0, %v255
    %v257 = vrot.slane %v252, %v256
    %v275 = vunpack.c.l.b16 %v236
    %v276 = vunpack.c.l.b16 %v237
    %v277 = vunpack.c.l.b16 %v238
    %v278 = vunpack.c.l.b16 %v239
    %v279 = vunpack.c.l.b16 %v240
    %v280 = vunpack.c.l.b16 %v241
    %v281 = vunpack.c.l.b16 %v242
    %v282 = vunpack.c.l.b16 %v243
    %v283 = vunpack.c.l.b16 %v244
    %v284 = vunpack.c.l.b16 %v245
    %v285 = vunpack.c.l.b16 %v246
    %v286 = vunpack.c.l.b16 %v247
    %v287 = vunpack.c.l.b16 %v248
    %v288 = vunpack.c.l.b16 %v249
    %v289 = vunpack.c.l.b16 %v250
    %v290 = vunpack.c.l.b16 %v251
    %v291 = vpack.c.b16 %v276, %v275
    %v292 = vpack.c.b16 %v278, %v277
    %v293 = vpack.c.b16 %v280, %v279
    %v294 = vpack.c.b16 %v282, %v281
    %v295 = vpack.c.b16 %v284, %v283
    %v296 = vpack.c.b16 %v286, %v285
    %v297 = vpack.c.b16 %v288, %v287
    %v298 = vpack.c.b16 %v290, %v289
    %307 = vmatprep.subr.bf16.mxu0 0
    %308 = vmatpush1.bf16.msra.mxu0 %v291
    %309 = vmatprep.subr.bf16.mxu0 0
    %310 = vmatpush1.bf16.msra.mxu0 %v292
    %311 = vmatprep.subr.bf16.mxu0 0
    %312 = vmatpush1.bf16.msra.mxu0 %v293
    %313 = vmatprep.subr.bf16.mxu0 0
    %314 = vmatpush1.bf16.msra.mxu0 %v294
    %315 = vmatprep.subr.bf16.mxu0 0
    %316 = vmatpush1.bf16.msra.mxu0 %v295
    %317 = vmatprep.subr.bf16.mxu0 0
    %318 = vmatpush1.bf16.msra.mxu0 %v296
    %319 = vmatprep.subr.bf16.mxu0 0
    %320 = vmatpush1.bf16.msra.mxu0 %v297
    %321 = vmatprep.subr.bf16.mxu0 0
    %322 = vmatpush1.bf16.msra.mxu0 %v298
    %323 = vmatprep.subr.bf16.mxu0 0
    %324 = vmatpush1.bf16.msra.mxu0 0
    %325 = vmatprep.subr.bf16.mxu0 0
    %326 = vmatpush1.bf16.msra.mxu0 0
    %327 = vmatprep.subr.bf16.mxu0 0
    %328 = vmatpush1.bf16.msra.mxu0 0
    %329 = vmatprep.subr.bf16.mxu0 0
    %330 = vmatpush1.bf16.msra.mxu0 0
    %331 = vmatprep.subr.bf16.mxu0 0
    %332 = vmatpush1.bf16.msra.mxu0 0
    %333 = vmatprep.subr.bf16.mxu0 0
    %334 = vmatpush1.bf16.msra.mxu0 0
    %335 = vmatprep.subr.bf16.mxu0 0
    %336 = vmatpush1.bf16.msra.mxu0 0
    %337 = vmatprep.subr.bf16.mxu0 0
    %338 = vmatpush1.bf16.msra.mxu0 0
    %339 = vmatprep.mubr.bf16.mxu0 0
    %340 = vmatmul.mubr.bf16.gmra.mrb[0].mxu0 %v235
    %v341 = vpop.f32.mrb[0].mxu0
    %v342 = vadd.f32 %v257, %v341
    %v343 = vpop.f32.mrb[0].mxu0
    %v344 = vpop.f32.mrb[0].mxu0
    %v345 = vadd.f32 %v257, %v344
    %v346 = vpop.f32.mrb[0].mxu0
    %347 = vdwg.mxu0
    %v348 = vtanh.pop %v342
    %v349 = vtanh.pop %v345
    %v350 = vpack.c.bf16 %v349, %v348
    %v352 = vunpack.c.l.b16 %v350
    %v353 = vunpack.c.h.b16 %v350
    %v354 = vpack.c.b16 %v352, %v352
    %v355 = vpack.c.b16 %v353, %v353
    %358 = vst [vmem:[%s7] sm:$0xf] %v354
    %359 = vst [vmem:[%s7 + $0x4] sm:$0xf] %v355
    // Predicated region
    $region38: #{actor_forward.1} parent=1 // pred_check
      _
    $region39: #{actor_forward.1} parent=1 // pred_check_branch
      %361 = sbr.rel (0) target = $region41
    $region40: #{actor_forward.1} parent=1 // pred_region
      _
    $region41: #{actor_forward.1} parent=1 // pred_fallthru
      _
    // Predicated region
    $region42: #{actor_forward.1} parent=1 // pred_check
      _
    $region43: #{actor_forward.1} parent=1 // pred_check_branch
      %363 = sbr.rel (0) target = $region45
    $region44: #{actor_forward.1} parent=1 // pred_region
      _
    $region45: #{actor_forward.1} parent=1 // pred_fallthru
      _
    %364 = vsyncpa [#allocation3], 1
    %365 = vsyncpa [#allocation5], 1

</llo_original>
